<compile_context>
chip_gen: v6e
topology: v6e:2x2x1
jax: 0.10.0
libtpu: 0.0.40
codegen_flags: <defaults>
</compile_context>

<pallas_src>
import numpy as np
import jax
import jax.numpy as jnp
from jax.experimental import pallas as pl
from jax.experimental.pallas import tpu as pltpu


# ----------------------------- Pallas kernel ------------------------------

def _fused_temporal_gnn_kernel(
    a_ref,        # [N, N]        bf16   normalized adjacency A_hat
    x_ref,        # [N, F_in]     bf16   node features
    idx_ref,      # [2*bb, 1]     int32  this block's user rows then item rows
    wc_ref,       # [F_in + H, H] bf16   conv1 weight stacked over conv2 weight
    wf1_ref,      # [2H, 64]      bf16   fc1 weight (unsplit)
    wf2_ref,      # [64, 32]      bf16   fc2 weight
    consts_ref,   # [8, H]        f32    b_conv1 | b_conv2 | b_fc1 | b_fc2 | w_out | b_out
    o_ref,        # [bb, 128]     f32    lane-dense output slab (col 0 = scores)
):
    f32, bf16 = jnp.float32, jnp.bfloat16
    n = a_ref.shape[0]
    f_in = x_ref.shape[1]
    two_bb = idx_ref.shape[0]
    bb = two_bb // 2

    a = a_ref[...]                                                    # [N, N] bf16
    consts = consts_ref[...]                                          # [8, H] f32

    # ---- conv1: relu((A_hat @ X) @ W1 + b1) ----
    # F_in (64) < H (128): aggregate first so the N*N contraction runs at
    # the narrower lane width.
    ax = jnp.dot(a, x_ref[...], preferred_element_type=f32)           # [N, F_in]
    h1 = jnp.dot(ax.astype(bf16), wc_ref[:f_in, :], preferred_element_type=f32)
    h1 = jnp.maximum(h1 + consts[0:1, :], 0.0)                        # [N, H] f32
    # F.dropout(p=0.2) is identity in eval mode.

    # ---- conv2: (A_hat @ h1) @ W2 + b2 (no relu) ----
    ah1 = jnp.dot(a, h1.astype(bf16), preferred_element_type=f32)
    h2 = jnp.dot(ah1.astype(bf16), wc_ref[f_in:, :], preferred_element_type=f32)
    h2 = (h2 + consts[1:2, :]).astype(bf16)                           # [N, H] bf16

    # ---- single merged one-hot batch gather (h2 never leaves VMEM) ----
    # rows 0..bb-1 select user embeddings, rows bb..2bb-1 select item embeddings.
    lane = jax.lax.broadcasted_iota(jnp.int32, (two_bb, n), 1)        # [2bb, N]
    sel = (lane == idx_ref[...]).astype(bf16)                         # [2bb, N] exact one-hot
    g = jnp.dot(sel, h2, preferred_element_type=f32)                  # [2bb, H]

    # ---- MLP head (bf16 operands, f32 accumulation) ----
    # lane-concat of two full-width [bb, H] tiles = adjacent vregs, no XLU;
    # K = 2H = 256 fills one MXU pass on v6e/v7x.
    combined = jnp.concatenate([g[:bb], g[bb:]], axis=-1).astype(bf16)   # [bb, 2H]
    z1 = jnp.dot(combined, wf1_ref[...], preferred_element_type=f32) + consts[2:3, :64]
    z1 = jnp.maximum(z1, 0.0)                                         # [bb, 64]
    z2 = jnp.dot(z1.astype(bf16), wf2_ref[...], preferred_element_type=f32) + consts[3:4, :32]
    z2 = jnp.maximum(z2, 0.0)                                         # [bb, 32]

    # Output layer as VPU multiply + lane reduction (avoids a 1-lane MXU pop).
    logits = jnp.sum(z2 * consts[4:5, :32], axis=-1, keepdims=True) + consts[5:6, :1]
    sig = jax.nn.sigmoid(logits)                                      # [bb, 1]

    # Lane-dense store (unmasked vst across the padded 128-lane slab);
    # the wrapper slices column 0.
    o_ref[...] = jnp.broadcast_to(sig, o_ref.shape)


# ------------------------------- glue (JAX) --------------------------------

def _resident_spec(arr):
    """Full-array block, same block for every grid point (stays resident)."""
    nd = arr.ndim
    return pl.BlockSpec(arr.shape, lambda i, nd=nd: (0,) * nd)


def temporal_gnn_forward(packed, a_hat, x, batch_user_indices, batch_item_indices,
                         num_users):
    """num_users is the static graph property (item node row offset), NOT derived
    from the batch — fixes the previous wrong `N - |unique(items)|` derivation."""
    n, f_in = x.shape
    h = packed["w_conv"].shape[1]
    bsz = batch_user_indices.shape[0]

    # Batch blocks: sublane-aligned (multiples of 8).  Two blocks when possible
    # so the "parallel" grid axis can use both TensorCores on v7x; on v5e/v6e
    # the grid just iterates (the tiny GCN is recomputed per block — negligible
    # at N=16; at realistic N the GCN should be its own tiled stage instead).
    if bsz % 8 != 0:
        raise ValueError("batch size must be a multiple of 8")
    nb = 2 if bsz % 16 == 0 else 1
    bb = bsz // nb

    # Per batch block: bb user rows then bb item rows  ->  one [2B, 1] operand.
    uidx = batch_user_indices.astype(jnp.int32).reshape(nb, bb)
    iidx = (batch_item_indices.astype(jnp.int32) + num_users).reshape(nb, bb)
    idx = jnp.concatenate([uidx, iidx], axis=1).reshape(2 * bsz, 1)

    a_bf16 = a_hat.astype(jnp.bfloat16)
    x_bf16 = x.astype(jnp.bfloat16)

    operands = (a_bf16, x_bf16, idx,
                packed["w_conv"], packed["w_fc1"], packed["w_fc2"], packed["consts"])

    out_lanes = 128  # lane-dense padded output slab

    flops = (nb * 2 * (n * n * f_in + n * f_in * h + n * n * h + n * h * h)
             + 2 * (2 * bsz) * n * h
             + 2 * bsz * (2 * h) * 64 + 2 * bsz * 64 * 32 + 2 * bsz * 32)
    bytes_accessed = int(sum(int(op.size) * np.dtype(op.dtype).itemsize
                             for op in operands) + bsz * out_lanes * 4)
    cost = pl.CostEstimate(flops=int(flops), transcendentals=int(bsz),
                           bytes_accessed=bytes_accessed)

    out = pl.pallas_call(
        _fused_temporal_gnn_kernel,
        out_shape=jax.ShapeDtypeStruct((bsz, out_lanes), jnp.float32),
        grid_spec=pltpu.PrefetchScalarGridSpec(
            num_scalar_prefetch=0,
            grid=(nb,),
            in_specs=[
                _resident_spec(a_bf16),
                _resident_spec(x_bf16),
                pl.BlockSpec((2 * bb, 1), lambda i: (i, 0)),
                _resident_spec(packed["w_conv"]),
                _resident_spec(packed["w_fc1"]),
                _resident_spec(packed["w_fc2"]),
                _resident_spec(packed["consts"]),
            ],
            out_specs=pl.BlockSpec((bb, out_lanes), lambda i: (i, 0)),
        ),
        compiler_params=pltpu.CompilerParams(dimension_semantics=("parallel",)),
        cost_estimate=cost,
    )(*operands)

    return out[:, 0]  # torch .squeeze() on [B, 1] -> [B]


def gcn_norm_dense_np(edge_index, num_nodes):
    """Dense D^{-1/2}(A+I)D^{-1/2}, PyG GCNConv default normalization.
    Host-side numpy, computed ONCE per static graph (hoisted out of forward)."""
    ei = np.asarray(edge_index)
    a = np.zeros((num_nodes, num_nodes), np.float32)
    np.add.at(a, (ei[1], ei[0]), 1.0)               # message j -> i stored at A[i, j]
    a = a + np.eye(num_nodes, dtype=np.float32)     # self loops
    deg = a.sum(axis=1)
    dinv = np.where(deg > 0, 1.0 / np.sqrt(deg), 0.0).astype(np.float32)
    return dinv[:, None] * a * dinv[None, :]


def init_params(key, embedding_dim, hidden_dim):
    """Natural (per-layer) parameters in f32, [in, out] layout."""
    ks = jax.random.split(key, 5)
    s = 0.1
    f32 = jnp.float32
    return {
        "w_conv1": jax.random.normal(ks[0], (embedding_dim, hidden_dim), f32) * s,
        "b_conv1": jnp.zeros((hidden_dim,), f32),
        "w_conv2": jax.random.normal(ks[1], (hidden_dim, hidden_dim), f32) * s,
        "b_conv2": jnp.zeros((hidden_dim,), f32),
        "w_fc1": jax.random.normal(ks[2], (hidden_dim * 2, 64), f32) * s,
        "b_fc1": jnp.zeros((64,), f32),
        "w_fc2": jax.random.normal(ks[3], (64, 32), f32) * s,
        "b_fc2": jnp.zeros((32,), f32),
        "w_out": jax.random.normal(ks[4], (32, 1), f32) * s,
        "b_out": jnp.zeros((1,), f32),
    }


def pack_params(params):
    """Pack natural params into the 4 kernel weight operands (done once):
       - w_conv : [F_in + H, H] bf16  (conv1 weight stacked over conv2 weight)
       - w_fc1  : [2H, 64]      bf16
       - w_fc2  : [64, 32]      bf16
       - consts : [8, H]        f32   rows = b_conv1, b_conv2, b_fc1, b_fc2, w_out, b_out
    """
    f32, bf16 = jnp.float32, jnp.bfloat16
    h = params["w_conv1"].shape[1]
    assert h >= 64, "consts slab layout assumes hidden_dim >= 64"
    consts = jnp.zeros((8, h), f32)
    consts = consts.at[0, :].set(params["b_conv1"])
    consts = consts.at[1, :].set(params["b_conv2"])
    consts = consts.at[2, :64].set(params["b_fc1"])
    consts = consts.at[3, :32].set(params["b_fc2"])
    consts = consts.at[4, :32].set(params["w_out"].reshape(32))
    consts = consts.at[5, 0].set(params["b_out"].reshape(()))
    return {
        "w_conv": jnp.concatenate([params["w_conv1"], params["w_conv2"]], axis=0).astype(bf16),
        "w_fc1": params["w_fc1"].astype(bf16),
        "w_fc2": params["w_fc2"].astype(bf16),
        "consts": consts,
    }


# --------------------------------- main ------------------------------------

if __name__ == "__main__":
    key = jax.random.PRNGKey(0)
    k_x, k_p = jax.random.split(key)

    num_user_nodes, num_item_nodes = 8, 8
    N = num_user_nodes + num_item_nodes          # 16 graph nodes (multiple of 8 sublanes)
    embedding_dim, hidden_dim = 64, 128          # module defaults; 128 = full lane width
    batch = 16                                   # two sublane-aligned batch blocks of 8

    # node features [N, embedding_dim]
    x = jax.random.normal(k_x, (N, embedding_dim), jnp.float32)

    # deterministic bipartite user<->item edges (both directions)
    src, dst = [], []
    for u in range(num_user_nodes):
        for it in (u % num_item_nodes, (u + 3) % num_item_nodes):
            item_node = num_user_nodes + it
            src += [u, item_node]
            dst += [item_node, u]
    edge_index = np.array([src, dst], dtype=np.int32)   # [2, 32]

    # A_hat is static for a fixed graph: build & normalize once on host.
    a_hat = jnp.asarray(gcn_norm_dense_np(edge_index, N))

    batch_user_indices = jnp.arange(batch, dtype=jnp.int32) % num_user_nodes
    batch_item_indices = (jnp.arange(batch, dtype=jnp.int32) * 3 + 1) % num_item_nodes

    params = init_params(k_p, embedding_dim, hidden_dim)
    packed = pack_params(params)                 # done once, outside the forward

    fwd = jax.jit(temporal_gnn_forward)
    scores = fwd(packed, a_hat, x, batch_user_indices, batch_item_indices,
                 num_user_nodes)                 # num_users is a static graph property
    scores = jax.block_until_ready(scores)

    assert scores.shape == (batch,)
    assert bool(jnp.all(jnp.isfinite(scores)))
    assert bool(jnp.all((scores >= 0.0) & (scores <= 1.0)))
    print("KERNEL_OK")
</pallas_src>

<mosaic_0001>
module attributes {stable_mosaic.version = 11 : i64} {
  func.func @_fused_temporal_gnn_kernel(%arg0: i32, %arg1: memref<16x16xbf16, #tpu.memory_space<vmem>>, %arg2: memref<16x64xbf16, #tpu.memory_space<vmem>>, %arg3: memref<16x1xi32, #tpu.memory_space<vmem>>, %arg4: memref<192x128xbf16, #tpu.memory_space<vmem>>, %arg5: memref<256x64xbf16, #tpu.memory_space<vmem>>, %arg6: memref<64x32xbf16, #tpu.memory_space<vmem>>, %arg7: memref<8x128xf32, #tpu.memory_space<vmem>>, %arg8: memref<8x128xf32, #tpu.memory_space<vmem>>) attributes {dimension_semantics = [#tpu.dimension_semantics<parallel>], iteration_bounds = array<i64: 2>, scalar_prefetch = 0 : i64, scratch_operands = 0 : i64, tpu.core_type = #tpu.core_type<tc>, window_params = [{pipeline_mode = #tpu.pipeline_mode<synchronous>, transform_indices = @transform_0, window_bounds = array<i64: 16, 16>}, {pipeline_mode = #tpu.pipeline_mode<synchronous>, transform_indices = @transform_1, window_bounds = array<i64: 16, 64>}, {transform_indices = @transform_2, window_bounds = array<i64: 16, 1>}, {pipeline_mode = #tpu.pipeline_mode<synchronous>, transform_indices = @transform_3, window_bounds = array<i64: 192, 128>}, {pipeline_mode = #tpu.pipeline_mode<synchronous>, transform_indices = @transform_4, window_bounds = array<i64: 256, 64>}, {pipeline_mode = #tpu.pipeline_mode<synchronous>, transform_indices = @transform_5, window_bounds = array<i64: 64, 32>}, {pipeline_mode = #tpu.pipeline_mode<synchronous>, transform_indices = @transform_6, window_bounds = array<i64: 8, 128>}, {transform_indices = @transform_7, window_bounds = array<i64: 8, 128>}]} {
    %c0 = arith.constant 0 : index
    %c0_0 = arith.constant 0 : index
    %0 = vector.load %arg1[%c0, %c0_0] : memref<16x16xbf16, #tpu.memory_space<vmem>>, vector<16x16xbf16>
    %c0_1 = arith.constant 0 : index
    %c0_2 = arith.constant 0 : index
    %1 = vector.load %arg7[%c0_1, %c0_2] : memref<8x128xf32, #tpu.memory_space<vmem>>, vector<8x128xf32>
    %c0_3 = arith.constant 0 : index
    %c0_4 = arith.constant 0 : index
    %2 = vector.load %arg2[%c0_3, %c0_4] : memref<16x64xbf16, #tpu.memory_space<vmem>>, vector<16x64xbf16>
    %cst = arith.constant dense<0.000000e+00> : vector<16x64xf32>
    %3 = tpu.matmul %0, %2, %cst {dimension_numbers = #tpu.dot_dimension_numbers<[1], [0], [0], [1], [0, 0, 1, 1], [], []>} : vector<16x16xbf16>, vector<16x64xbf16>, vector<16x64xf32> -> vector<16x64xf32>
    %4 = arith.truncf %3 : vector<16x64xf32> to vector<16x64xbf16>
    %c0_5 = arith.constant 0 : index
    %c0_6 = arith.constant 0 : index
    %5 = vector.load %arg4[%c0_5, %c0_6] : memref<192x128xbf16, #tpu.memory_space<vmem>>, vector<64x128xbf16>
    %cst_7 = arith.constant dense<0.000000e+00> : vector<16x128xf32>
    %6 = tpu.matmul %4, %5, %cst_7 {dimension_numbers = #tpu.dot_dimension_numbers<[1], [0], [0], [1], [0, 0, 1, 1], [], []>} : vector<16x64xbf16>, vector<64x128xbf16>, vector<16x128xf32> -> vector<16x128xf32>
    %7 = vector.extract_strided_slice %1 {offsets = [0, 0], sizes = [1, 128], strides = [1, 1]} : vector<8x128xf32> to vector<1x128xf32>
    %8 = vector.broadcast %7 : vector<1x128xf32> to vector<16x128xf32>
    %9 = arith.addf %6, %8 : vector<16x128xf32>
    %cst_8 = arith.constant 0.000000e+00 : f32
    %10 = vector.broadcast %cst_8 : f32 to vector<16x128xf32>
    %11 = arith.maximumf %9, %10 : vector<16x128xf32>
    %12 = arith.truncf %11 : vector<16x128xf32> to vector<16x128xbf16>
    %cst_9 = arith.constant dense<0.000000e+00> : vector<16x128xf32>
    %13 = tpu.matmul %0, %12, %cst_9 {dimension_numbers = #tpu.dot_dimension_numbers<[1], [0], [0], [1], [0, 0, 1, 1], [], []>} : vector<16x16xbf16>, vector<16x128xbf16>, vector<16x128xf32> -> vector<16x128xf32>
    %14 = arith.truncf %13 : vector<16x128xf32> to vector<16x128xbf16>
    %c64 = arith.constant 64 : index
    %c0_10 = arith.constant 0 : index
    %15 = vector.load %arg4[%c64, %c0_10] : memref<192x128xbf16, #tpu.memory_space<vmem>>, vector<128x128xbf16>
    %cst_11 = arith.constant dense<0.000000e+00> : vector<16x128xf32>
    %16 = tpu.matmul %14, %15, %cst_11 {dimension_numbers = #tpu.dot_dimension_numbers<[1], [0], [0], [1], [0, 0, 1, 1], [], []>} : vector<16x128xbf16>, vector<128x128xbf16>, vector<16x128xf32> -> vector<16x128xf32>
    %17 = vector.extract_strided_slice %1 {offsets = [1, 0], sizes = [1, 128], strides = [1, 1]} : vector<8x128xf32> to vector<1x128xf32>
    %18 = vector.broadcast %17 : vector<1x128xf32> to vector<16x128xf32>
    %19 = arith.addf %16, %18 : vector<16x128xf32>
    %20 = arith.truncf %19 : vector<16x128xf32> to vector<16x128xbf16>
    %21 = tpu.iota {dimensions = array<i32: 1>} : vector<16x16xi32>
    %c0_12 = arith.constant 0 : index
    %c0_13 = arith.constant 0 : index
    %22 = vector.load %arg3[%c0_12, %c0_13] : memref<16x1xi32, #tpu.memory_space<vmem>>, vector<16x1xi32>
    %23 = vector.broadcast %22 : vector<16x1xi32> to vector<16x16xi32>
    %24 = arith.cmpi eq, %21, %23 : vector<16x16xi32>
    %25 = arith.extui %24 : vector<16x16xi1> to vector<16x16xi32>
    %26 = arith.sitofp %25 : vector<16x16xi32> to vector<16x16xf32>
    %27 = arith.truncf %26 : vector<16x16xf32> to vector<16x16xbf16>
    %cst_14 = arith.constant dense<0.000000e+00> : vector<16x128xf32>
    %28 = tpu.matmul %27, %20, %cst_14 {dimension_numbers = #tpu.dot_dimension_numbers<[1], [0], [0], [1], [0, 0, 1, 1], [], []>} : vector<16x16xbf16>, vector<16x128xbf16>, vector<16x128xf32> -> vector<16x128xf32>
    %29 = vector.extract_strided_slice %28 {offsets = [0, 0], sizes = [8, 128], strides = [1, 1]} : vector<16x128xf32> to vector<8x128xf32>
    %30 = vector.extract_strided_slice %28 {offsets = [8, 0], sizes = [8, 128], strides = [1, 1]} : vector<16x128xf32> to vector<8x128xf32>
    %31 = tpu.concatenate %29, %30 in 1 : vector<8x128xf32>, vector<8x128xf32> -> vector<8x256xf32>
    %32 = arith.truncf %31 : vector<8x256xf32> to vector<8x256xbf16>
    %c0_15 = arith.constant 0 : index
    %c0_16 = arith.constant 0 : index
    %33 = vector.load %arg5[%c0_15, %c0_16] : memref<256x64xbf16, #tpu.memory_space<vmem>>, vector<256x64xbf16>
    %cst_17 = arith.constant dense<0.000000e+00> : vector<8x64xf32>
    %34 = tpu.matmul %32, %33, %cst_17 {dimension_numbers = #tpu.dot_dimension_numbers<[1], [0], [0], [1], [0, 0, 1, 1], [], []>} : vector<8x256xbf16>, vector<256x64xbf16>, vector<8x64xf32> -> vector<8x64xf32>
    %35 = vector.extract_strided_slice %1 {offsets = [2, 0], sizes = [1, 64], strides = [1, 1]} : vector<8x128xf32> to vector<1x64xf32>
    %36 = vector.broadcast %35 : vector<1x64xf32> to vector<8x64xf32>
    %37 = arith.addf %34, %36 : vector<8x64xf32>
    %cst_18 = arith.constant 0.000000e+00 : f32
    %38 = vector.broadcast %cst_18 : f32 to vector<8x64xf32>
    %39 = arith.maximumf %37, %38 : vector<8x64xf32>
    %40 = arith.truncf %39 : vector<8x64xf32> to vector<8x64xbf16>
    %c0_19 = arith.constant 0 : index
    %c0_20 = arith.constant 0 : index
    %41 = vector.load %arg6[%c0_19, %c0_20] : memref<64x32xbf16, #tpu.memory_space<vmem>>, vector<64x32xbf16>
    %cst_21 = arith.constant dense<0.000000e+00> : vector<8x32xf32>
    %42 = tpu.matmul %40, %41, %cst_21 {dimension_numbers = #tpu.dot_dimension_numbers<[1], [0], [0], [1], [0, 0, 1, 1], [], []>} : vector<8x64xbf16>, vector<64x32xbf16>, vector<8x32xf32> -> vector<8x32xf32>
    %43 = vector.extract_strided_slice %1 {offsets = [3, 0], sizes = [1, 32], strides = [1, 1]} : vector<8x128xf32> to vector<1x32xf32>
    %44 = vector.broadcast %43 : vector<1x32xf32> to vector<8x32xf32>
    %45 = arith.addf %42, %44 : vector<8x32xf32>
    %cst_22 = arith.constant 0.000000e+00 : f32
    %46 = vector.broadcast %cst_22 : f32 to vector<8x32xf32>
    %47 = arith.maximumf %45, %46 : vector<8x32xf32>
    %48 = vector.extract_strided_slice %1 {offsets = [4, 0], sizes = [1, 32], strides = [1, 1]} : vector<8x128xf32> to vector<1x32xf32>
    %49 = vector.broadcast %48 : vector<1x32xf32> to vector<8x32xf32>
    %50 = arith.mulf %47, %49 : vector<8x32xf32>
    %cst_23 = arith.constant dense<0.000000e+00> : vector<8xf32>
    %51 = vector.multi_reduction <add>, %50, %cst_23 [1] : vector<8x32xf32> to vector<8xf32>
    %52 = vector.shape_cast %51 : vector<8xf32> to vector<8x1xf32>
    %53 = vector.extract_strided_slice %1 {offsets = [5, 0], sizes = [1, 1], strides = [1, 1]} : vector<8x128xf32> to vector<1x1xf32>
    %54 = vector.broadcast %53 : vector<1x1xf32> to vector<8x1xf32>
    %55 = arith.addf %52, %54 : vector<8x1xf32>
    %56 = arith.negf %55 : vector<8x1xf32>
    %57 = math.exp %56 : vector<8x1xf32>
    %cst_24 = arith.constant 1.000000e+00 : f32
    %58 = vector.broadcast %cst_24 : f32 to vector<8x1xf32>
    %59 = arith.addf %58, %57 : vector<8x1xf32>
    %60 = arith.divf %58, %59 : vector<8x1xf32>
    %61 = vector.shape_cast %60 : vector<8x1xf32> to vector<8x1xf32>
    %62 = vector.broadcast %61 : vector<8x1xf32> to vector<8x128xf32>
    %c0_25 = arith.constant 0 : index
    %c0_26 = arith.constant 0 : index
    %63 = vector.load %arg8[%c0_25, %c0_26] : memref<8x128xf32, #tpu.memory_space<vmem>>, vector<8x128xf32>
    tpu.vector_store %arg8[%c0_25, %c0_26], %62 {strides = array<i32>} : memref<8x128xf32, #tpu.memory_space<vmem>>, vector<8x128xf32>,
    return
  }
  func.func @transform_0(%arg0: i32) -> (i32, i32) {
    %c0_i32 = arith.constant 0 : i32
    %c0_i32_0 = arith.constant 0 : i32
    %c0_i32_1 = arith.constant 0 : i32
    return %c0_i32, %c0_i32_0 : i32, i32
  }
  func.func @transform_1(%arg0: i32) -> (i32, i32) {
    %c0_i32 = arith.constant 0 : i32
    %c0_i32_0 = arith.constant 0 : i32
    %c0_i32_1 = arith.constant 0 : i32
    return %c0_i32, %c0_i32_0 : i32, i32
  }
  func.func @transform_2(%arg0: i32) -> (i32, i32) {
    %c0_i32 = arith.constant 0 : i32
    %c0_i32_0 = arith.constant 0 : i32
    return %arg0, %c0_i32 : i32, i32
  }
  func.func @transform_3(%arg0: i32) -> (i32, i32) {
    %c0_i32 = arith.constant 0 : i32
    %c0_i32_0 = arith.constant 0 : i32
    %c0_i32_1 = arith.constant 0 : i32
    return %c0_i32, %c0_i32_0 : i32, i32
  }
  func.func @transform_4(%arg0: i32) -> (i32, i32) {
    %c0_i32 = arith.constant 0 : i32
    %c0_i32_0 = arith.constant 0 : i32
    %c0_i32_1 = arith.constant 0 : i32
    return %c0_i32, %c0_i32_0 : i32, i32
  }
  func.func @transform_5(%arg0: i32) -> (i32, i32) {
    %c0_i32 = arith.constant 0 : i32
    %c0_i32_0 = arith.constant 0 : i32
    %c0_i32_1 = arith.constant 0 : i32
    return %c0_i32, %c0_i32_0 : i32, i32
  }
  func.func @transform_6(%arg0: i32) -> (i32, i32) {
    %c0_i32 = arith.constant 0 : i32
    %c0_i32_0 = arith.constant 0 : i32
    %c0_i32_1 = arith.constant 0 : i32
    return %c0_i32, %c0_i32_0 : i32, i32
  }
  func.func @transform_7(%arg0: i32) -> (i32, i32) {
    %c0_i32 = arith.constant 0 : i32
    %c0_i32_0 = arith.constant 0 : i32
    return %arg0, %c0_i32 : i32, i32
  }
}

</mosaic_0001>

<llo_original>
// kernel: temporal_gnn_forward.1
$region0: #{temporal_gnn_forward.1}
  #allocation0 [shape = 'u32[]', space=smem, size = 0x4, offset = 0x4, fixed_abs, tag = 'smem constant byte address 0x4 - core index']
  #allocation1 [shape = 'u32[144,128]{1,0:T(1,128)}', space=vmem, size = 0x12000, scoped, tag = 'internal scratch']
  %s0 = inlined_call_operand.vmem [shape: bf16[16,16], index: 0, kind: input, shape index: {}]
  %s1 = inlined_call_operand.vmem [shape: bf16[16,64], index: 1, kind: input, shape index: {}]
  %s2 = inlined_call_operand.vmem [shape: s32[32,1], index: 2, kind: input, shape index: {}]
  %s3 = inlined_call_operand.vmem [shape: bf16[192,128], index: 3, kind: input, shape index: {}]
  %s4 = inlined_call_operand.vmem [shape: bf16[256,64], index: 4, kind: input, shape index: {}]
  %s5 = inlined_call_operand.vmem [shape: bf16[64,32], index: 5, kind: input, shape index: {}]
  %s6 = inlined_call_operand.vmem [shape: f32[8,128], index: 6, kind: input, shape index: {}]
  %s7 = inlined_call_operand.vmem [shape: f32[16,128], index: 7, kind: output, shape index: {}]
  %s8 = sld [smem:[#allocation0]]
  $region61: #{temporal_gnn_forward.1} parent=0
    _
  %s10 = ssub.s32 1, %s8
  %s11 = scalar_select 0, %s10, %s8
  loop: start=0, step=1, limit=4
  $region2: #{temporal_gnn_forward.1} parent=0 // loop_pre_header
    _
  $region3: #{temporal_gnn_forward.1} parent=0 // loop_header
    %s13 = sphi 0, %s17
    %p14 = scmp.ge.s32.totalorder %s13, 4
    %s21 = sphi 0, %s21
    %s23 = sphi 0, %s21
    %s24 = sphi 0, %s23
    %s38 = sphi 0, %s24
    %s42 = sphi 0, %s42
    %s44 = sphi 0, %s42
    %s45 = sphi 0, %s44
    %s59 = sphi 0, %s45
    %s65 = sphi 0, %s67
    %s68 = sphi 0, %s65
    %s69 = sphi 0, %s68
    %s85 = sphi 0, %s69
    %s89 = sphi 0, %s89
    %s91 = sphi 0, %s89
    %s92 = sphi 0, %s91
    %s106 = sphi 0, %s92
    %s110 = sphi 0, %s110
    %s112 = sphi 0, %s110
    %s113 = sphi 0, %s112
    %s127 = sphi 0, %s113
    %s131 = sphi 0, %s131
    %s133 = sphi 0, %s131
    %s134 = sphi 0, %s133
    %s148 = sphi 0, %s134
    %s152 = sphi 0, %s152
    %s154 = sphi 0, %s152
    %s155 = sphi 0, %s154
    %s169 = sphi 0, %s155
    %s175 = sphi 0, %s177
    %s178 = sphi 0, %s175
    %s179 = sphi 0, %s178
    %s195 = sphi 0, %s179
  $region4: #{temporal_gnn_forward.1} parent=0 // loop_header_branch
    %16 = sbr.rel (%p14) target = $region8
  $region5: #{temporal_gnn_forward.1} parent=0 // loop_body
    %s18 = ssub.s32 %s13, 1
    %s19 = ssub.s32 %s13, 2
    %s20 = sadd.s32 %s13, 1
    %s22 = sadd.s32 %s21, 1
    %p25 = scmp.eq.s32.totalorder %s13, 1
    %p26 = scmp.ne.s32.totalorder %s21, %s23
    %p27 = scmp.eq.s32.totalorder %s13, 0
    %p28 = por %p26, %p27
    %p29 = scmp.ne.s32.totalorder %s21, %s23
    %p30 = scmp.eq.s32.totalorder %s18, 1
    %p31 = por %p29, %p30
    %p32 = scmp.ne.s32.totalorder %s23, %s24
    %p33 = scmp.eq.s32.totalorder %s18, 0
    %p34 = por %p32, %p33
    %p35 = scmp.ne.s32.totalorder %s23, %s24
    %p36 = scmp.eq.s32.totalorder %s19, 1
    %p37 = por %p35, %p36
    %p39 = scmp.ne.s32.totalorder %s24, %s38
    %p40 = scmp.eq.s32.totalorder %s19, 0
    %p41 = por %p39, %p40
    %s43 = sadd.s32 %s42, 1
    %p46 = scmp.eq.s32.totalorder %s13, 1
    %p47 = scmp.ne.s32.totalorder %s42, %s44
    %p48 = scmp.eq.s32.totalorder %s13, 0
    %p49 = por %p47, %p48
    %p50 = scmp.ne.s32.totalorder %s42, %s44
    %p51 = scmp.eq.s32.totalorder %s18, 1
    %p52 = por %p50, %p51
    %p53 = scmp.ne.s32.totalorder %s44, %s45
    %p54 = scmp.eq.s32.totalorder %s18, 0
    %p55 = por %p53, %p54
    %p56 = scmp.ne.s32.totalorder %s44, %s45
    %p57 = scmp.eq.s32.totalorder %s19, 1
    %p58 = por %p56, %p57
    %p60 = scmp.ne.s32.totalorder %s45, %s59
    %p61 = scmp.eq.s32.totalorder %s19, 0
    %p62 = por %p60, %p61
    %s63 = ssub.s32 %s13, %s20
    %p64 = scmp.eq.s32.totalorder %s63, 0
    %s66 = sadd.s32 %s65, 1
    %s67 = scalar_select %p64, %s65, %s66
    %p70 = pneg %p64
    %p71 = scmp.eq.s32.totalorder %s13, 1
    %p72 = por %p70, %p71
    %p73 = scmp.ne.s32.totalorder %s65, %s68
    %p74 = scmp.eq.s32.totalorder %s13, 0
    %p75 = por %p73, %p74
    %p76 = scmp.ne.s32.totalorder %s65, %s68
    %p77 = scmp.eq.s32.totalorder %s18, 1
    %p78 = por %p76, %p77
    %p79 = scmp.ne.s32.totalorder %s68, %s69
    %p80 = scmp.eq.s32.totalorder %s18, 0
    %p81 = por %p79, %p80
    %p82 = scmp.ne.s32.totalorder %s68, %s69
    %p83 = scmp.eq.s32.totalorder %s19, 1
    %p84 = por %p82, %p83
    %p86 = scmp.ne.s32.totalorder %s69, %s85
    %p87 = scmp.eq.s32.totalorder %s19, 0
    %p88 = por %p86, %p87
    %s90 = sadd.s32 %s89, 1
    %p93 = scmp.eq.s32.totalorder %s13, 1
    %p94 = scmp.ne.s32.totalorder %s89, %s91
    %p95 = scmp.eq.s32.totalorder %s13, 0
    %p96 = por %p94, %p95
    %p97 = scmp.ne.s32.totalorder %s89, %s91
    %p98 = scmp.eq.s32.totalorder %s18, 1
    %p99 = por %p97, %p98
    %p100 = scmp.ne.s32.totalorder %s91, %s92
    %p101 = scmp.eq.s32.totalorder %s18, 0
    %p102 = por %p100, %p101
    %p103 = scmp.ne.s32.totalorder %s91, %s92
    %p104 = scmp.eq.s32.totalorder %s19, 1
    %p105 = por %p103, %p104
    %p107 = scmp.ne.s32.totalorder %s92, %s106
    %p108 = scmp.eq.s32.totalorder %s19, 0
    %p109 = por %p107, %p108
    %s111 = sadd.s32 %s110, 1
    %p114 = scmp.eq.s32.totalorder %s13, 1
    %p115 = scmp.ne.s32.totalorder %s110, %s112
    %p116 = scmp.eq.s32.totalorder %s13, 0
    %p117 = por %p115, %p116
    %p118 = scmp.ne.s32.totalorder %s110, %s112
    %p119 = scmp.eq.s32.totalorder %s18, 1
    %p120 = por %p118, %p119
    %p121 = scmp.ne.s32.totalorder %s112, %s113
    %p122 = scmp.eq.s32.totalorder %s18, 0
    %p123 = por %p121, %p122
    %p124 = scmp.ne.s32.totalorder %s112, %s113
    %p125 = scmp.eq.s32.totalorder %s19, 1
    %p126 = por %p124, %p125
    %p128 = scmp.ne.s32.totalorder %s113, %s127
    %p129 = scmp.eq.s32.totalorder %s19, 0
    %p130 = por %p128, %p129
    %s132 = sadd.s32 %s131, 1
    %p135 = scmp.eq.s32.totalorder %s13, 1
    %p136 = scmp.ne.s32.totalorder %s131, %s133
    %p137 = scmp.eq.s32.totalorder %s13, 0
    %p138 = por %p136, %p137
    %p139 = scmp.ne.s32.totalorder %s131, %s133
    %p140 = scmp.eq.s32.totalorder %s18, 1
    %p141 = por %p139, %p140
    %p142 = scmp.ne.s32.totalorder %s133, %s134
    %p143 = scmp.eq.s32.totalorder %s18, 0
    %p144 = por %p142, %p143
    %p145 = scmp.ne.s32.totalorder %s133, %s134
    %p146 = scmp.eq.s32.totalorder %s19, 1
    %p147 = por %p145, %p146
    %p149 = scmp.ne.s32.totalorder %s134, %s148
    %p150 = scmp.eq.s32.totalorder %s19, 0
    %p151 = por %p149, %p150
    %s153 = sadd.s32 %s152, 1
    %p156 = scmp.eq.s32.totalorder %s13, 1
    %p157 = scmp.ne.s32.totalorder %s152, %s154
    %p158 = scmp.eq.s32.totalorder %s13, 0
    %p159 = por %p157, %p158
    %p160 = scmp.ne.s32.totalorder %s152, %s154
    %p161 = scmp.eq.s32.totalorder %s18, 1
    %p162 = por %p160, %p161
    %p163 = scmp.ne.s32.totalorder %s154, %s155
    %p164 = scmp.eq.s32.totalorder %s18, 0
    %p165 = por %p163, %p164
    %p166 = scmp.ne.s32.totalorder %s154, %s155
    %p167 = scmp.eq.s32.totalorder %s19, 1
    %p168 = por %p166, %p167
    %p170 = scmp.ne.s32.totalorder %s155, %s169
    %p171 = scmp.eq.s32.totalorder %s19, 0
    %p172 = por %p170, %p171
    %s173 = ssub.s32 %s13, %s20
    %p174 = scmp.eq.s32.totalorder %s173, 0
    %s176 = sadd.s32 %s175, 1
    %s177 = scalar_select %p174, %s175, %s176
    %p180 = pneg %p174
    %p181 = scmp.eq.s32.totalorder %s13, 1
    %p182 = por %p180, %p181
    %p183 = scmp.ne.s32.totalorder %s175, %s178
    %p184 = scmp.eq.s32.totalorder %s13, 0
    %p185 = por %p183, %p184
    %p186 = scmp.ne.s32.totalorder %s175, %s178
    %p187 = scmp.eq.s32.totalorder %s18, 1
    %p188 = por %p186, %p187
    %p189 = scmp.ne.s32.totalorder %s178, %s179
    %p190 = scmp.eq.s32.totalorder %s18, 0
    %p191 = por %p189, %p190
    %p192 = scmp.ne.s32.totalorder %s178, %s179
    %p193 = scmp.eq.s32.totalorder %s19, 1
    %p194 = por %p192, %p193
    %p196 = scmp.ne.s32.totalorder %s179, %s195
    %p197 = scmp.eq.s32.totalorder %s19, 0
    %p198 = por %p196, %p197
    %p199 = scmp.le.s32.totalorder 1, %s13
    %p200 = scmp.lt.s32.totalorder %s13, 3
    %p201 = pnand %p199, %p200
    %p202 = pneg %p201
    // Predicated region
    $region9: #{temporal_gnn_forward.1} parent=5 // pred_check
      _
    $region10: #{temporal_gnn_forward.1} parent=5 // pred_check_branch
      %204 = sbr.rel (%p201) target = $region12
    $region11: #{temporal_gnn_forward.1} parent=5 // pred_region
      %s205 = ssub.s32 %s13, 1
      // Predicated region
      $region13: #{temporal_gnn_forward.1} parent=11 // pred_check
        %p206 = pneg %p34
      $region14: #{temporal_gnn_forward.1} parent=11 // pred_check_branch
        %208 = sbr.rel (%p206) target = $region16
      $region15: #{temporal_gnn_forward.1} parent=11 // pred_region
        _
      $region16: #{temporal_gnn_forward.1} parent=11 // pred_fallthru
        _
      // Predicated region
      $region17: #{temporal_gnn_forward.1} parent=11 // pred_check
        %p209 = pneg %p55
      $region18: #{temporal_gnn_forward.1} parent=11 // pred_check_branch
        %211 = sbr.rel (%p209) target = $region20
      $region19: #{temporal_gnn_forward.1} parent=11 // pred_region
        _
      $region20: #{temporal_gnn_forward.1} parent=11 // pred_fallthru
        _
      // Predicated region
      $region21: #{temporal_gnn_forward.1} parent=11 // pred_check
        %p212 = pneg %p102
      $region22: #{temporal_gnn_forward.1} parent=11 // pred_check_branch
        %214 = sbr.rel (%p212) target = $region24
      $region23: #{temporal_gnn_forward.1} parent=11 // pred_region
        _
      $region24: #{temporal_gnn_forward.1} parent=11 // pred_fallthru
        _
      // Predicated region
      $region25: #{temporal_gnn_forward.1} parent=11 // pred_check
        %p215 = pneg %p123
      $region26: #{temporal_gnn_forward.1} parent=11 // pred_check_branch
        %217 = sbr.rel (%p215) target = $region28
      $region27: #{temporal_gnn_forward.1} parent=11 // pred_region
        _
      $region28: #{temporal_gnn_forward.1} parent=11 // pred_fallthru
        _
      // Predicated region
      $region29: #{temporal_gnn_forward.1} parent=11 // pred_check
        %p218 = pneg %p144
      $region30: #{temporal_gnn_forward.1} parent=11 // pred_check_branch
        %220 = sbr.rel (%p218) target = $region32
      $region31: #{temporal_gnn_forward.1} parent=11 // pred_region
        _
      $region32: #{temporal_gnn_forward.1} parent=11 // pred_fallthru
        _
      // Predicated region
      $region33: #{temporal_gnn_forward.1} parent=11 // pred_check
        %p221 = pneg %p165
      $region34: #{temporal_gnn_forward.1} parent=11 // pred_check_branch
        %223 = sbr.rel (%p221) target = $region36
      $region35: #{temporal_gnn_forward.1} parent=11 // pred_region
        _
      $region36: #{temporal_gnn_forward.1} parent=11 // pred_fallthru
        _
    $region12: #{temporal_gnn_forward.1} parent=5 // pred_fallthru
      _
    %p224 = scmp.lt.s32.totalorder %s13, 2
    // Predicated region
    $region37: #{temporal_gnn_forward.1} parent=5 // pred_check
      %p225 = pneg %p224
    $region38: #{temporal_gnn_forward.1} parent=5 // pred_check_branch
      %227 = sbr.rel (%p225) target = $region40
    $region39: #{temporal_gnn_forward.1} parent=5 // pred_region
      // Predicated region
      $region41: #{temporal_gnn_forward.1} parent=39 // pred_check
        %p228 = pneg %p75
      $region42: #{temporal_gnn_forward.1} parent=39 // pred_check_branch
        %230 = sbr.rel (%p228) target = $region44
      $region43: #{temporal_gnn_forward.1} parent=39 // pred_region
        %s231 = smul.u32 2, %s13
        %p232 = scmp.lt.s32.totalorder %s231, 3
        %s233 = scalar_select %p232, %s231, 3
        %s234 = smul.addr %s233, 8
        %s235 = scalar_lea.vmem %s2, %s234
        %s236 = smul.u32 2, %s13
      $region44: #{temporal_gnn_forward.1} parent=39 // pred_fallthru
        _
    $region40: #{temporal_gnn_forward.1} parent=5 // pred_fallthru
      _
    %p237 = scmp.le.s32.totalorder 1, %s13
    %p238 = scmp.lt.s32.totalorder %s13, 3
    %p239 = pnand %p237, %p238
    %p240 = pneg %p239
    // Predicated region
    $region45: #{temporal_gnn_forward.1} parent=5 // pred_check
      _
    $region46: #{temporal_gnn_forward.1} parent=5 // pred_check_branch
      %242 = sbr.rel (%p239) target = $region48
    $region47: #{temporal_gnn_forward.1} parent=5 // pred_region
      %s243 = ssub.s32 %s13, 1
      %p244 = pneg %p34
      %p245 = pneg %p31
      %p246 = pneg %p55
      %p247 = pneg %p52
      %s248 = smul.u32 2, %s18
      %p249 = scmp.lt.s32.totalorder %s248, 3
      %s250 = scalar_select %p249, %s248, 3
      %s251 = smul.addr %s250, 8
      %s252 = scalar_lea.vmem %s2, %s251
      %p253 = pneg %p81
      %p254 = pneg %p78
      %p255 = pneg %p102
      %p256 = pneg %p99
      %p257 = pneg %p123
      %p258 = pneg %p120
      %p259 = pneg %p144
      %p260 = pneg %p141
      %p261 = pneg %p165
      %p262 = pneg %p162
      %p263 = pneg %p191
      %p264 = pneg %p188
      %p265 = scmp.lt.s32.totalorder %s18, 1
      %s266 = scalar_select %p265, %s18, 1
      %s267 = smul.addr %s266, 8
      %s268 = scalar_lea.vmem %s7, %s267
      %s269 = smul.u32 2, %s18
      %p270 = scmp.lt.s32.totalorder %s269, 3
      %s271 = scalar_select %p270, %s269, 3
      %s272 = smul.addr %s271, 8
      %s273 = scalar_lea.vmem %s2, %s272
      %s274 = smul.u32 2, %s18
      %p275 = scmp.lt.s32.totalorder %s18, 1
      %s276 = scalar_select %p275, %s18, 1
      %s277 = smul.addr %s276, 8
      %s278 = scalar_lea.vmem %s7, %s277
      %v280 = vld [vmem:[%s0] sm:$0xf]
      %v281 = vld [vmem:[%s0 + $0x4] sm:$0xf]
      %v282 = vld [vmem:[%s6] sm:$0xff]
      %v283 = vld [vmem:[%s1] sm:$0xf]
      %v284 = vld [vmem:[%s1 + $0x4] sm:$0xf]
      %v287 = vunpack.c.l.b16 %v280
      %v288 = vunpack.c.l.b16 %v281
      %v289 = vpack.c.b16 %v288, %v287
      %v292 = vunpack.c.l.b16 %v283
      %v293 = vunpack.c.l.b16 %v284
      %v294 = vpack.c.b16 %v293, %v292
      %vm296 = vcmask 130048
      %v298 = vsel %vm296, %v289, 0
      %300 = vmatprep.subr.bf16.mxu0 0
      %301 = vmatpush1.bf16.msra.mxu0 0
      %302 = vmatprep.subr.bf16.mxu0 0
      %303 = vmatpush1.bf16.msra.mxu0 0
      %304 = vmatprep.subr.bf16.mxu0 0
      %305 = vmatpush1.bf16.msra.mxu0 0
      %306 = vmatprep.subr.bf16.mxu0 0
      %307 = vmatpush1.bf16.msra.mxu0 0
      %308 = vmatprep.subr.bf16.mxu0 0
      %309 = vmatpush1.bf16.msra.mxu0 0
      %310 = vmatprep.subr.bf16.mxu0 0
      %311 = vmatpush1.bf16.msra.mxu0 0
      %312 = vmatprep.subr.bf16.mxu0 0
      %313 = vmatpush1.bf16.msra.mxu0 0
      %314 = vmatprep.subr.bf16.mxu0 0
      %315 = vmatpush1.bf16.msra.mxu0 %v294
      %316 = vmatprep.subr.bf16.mxu0 0
      %317 = vmatpush2.bf16.msra.mxu0 0
      %318 = vmatprep.subr.bf16.mxu0 0
      %319 = vmatpush2.bf16.msra.mxu0 0
      %320 = vmatprep.subr.bf16.mxu0 0
      %321 = vmatpush2.bf16.msra.mxu0 0
      %322 = vmatprep.subr.bf16.mxu0 0
      %323 = vmatpush2.bf16.msra.mxu0 0
      %324 = vmatprep.subr.bf16.mxu0 0
      %325 = vmatpush2.bf16.msra.mxu0 0
      %326 = vmatprep.subr.bf16.mxu0 0
      %327 = vmatpush2.bf16.msra.mxu0 0
      %328 = vmatprep.subr.bf16.mxu0 0
      %329 = vmatpush2.bf16.msra.mxu0 0
      %330 = vmatprep.subr.bf16.mxu0 0
      %331 = vmatpush2.bf16.msra.mxu0 0
      %332 = vmatprep.mubr.bf16.mxu0 0
      %333 = vmatmul.mubr.bf16.gmra.mxu0 %v298
      %v334 = vpop.f32.mrf.mxu0
      %v335 = vadd.f32 0.0, %v334
      %v336 = vpop.f32.mrf.mxu0
      %v337 = vpop.f32.mrf.mxu0
      %v338 = vadd.f32 0.0, %v337
      %v339 = vpop.f32.mrf.mxu0
      %340 = vdwg.mxu0
      %v341 = vpack.c.bf16 %v338, %v335
      %v342 = vld [vmem:[%s3] sm:$0xf]
      %v343 = vld [vmem:[%s3 + $0x4] sm:$0xf]
      %v344 = vld [vmem:[%s3 + $0x8] sm:$0xf]
      %v345 = vld [vmem:[%s3 + $0xc] sm:$0xf]
      %v346 = vld [vmem:[%s3 + $0x10] sm:$0xf]
      %v347 = vld [vmem:[%s3 + $0x14] sm:$0xf]
      %v348 = vld [vmem:[%s3 + $0x18] sm:$0xf]
      %v349 = vld [vmem:[%s3 + $0x1c] sm:$0xf]
      %v350 = vlaneseq
      %v351 = vshrl.u32 %v350, 7
      %v352 = vsub.s32 0, %v351
      %v353 = vrot.slane %v282, %v352
      %v362 = vunpack.c.l.b16 %v342
      %v363 = vunpack.c.l.b16 %v343
      %v364 = vunpack.c.l.b16 %v344
      %v365 = vunpack.c.l.b16 %v345
      %v366 = vunpack.c.l.b16 %v346
      %v367 = vunpack.c.l.b16 %v347
      %v368 = vunpack.c.l.b16 %v348
      %v369 = vunpack.c.l.b16 %v349
      %v370 = vpack.c.b16 %v363, %v362
      %v371 = vpack.c.b16 %v365, %v364
      %v372 = vpack.c.b16 %v367, %v366
      %v373 = vpack.c.b16 %v369, %v368
      %vm378 = vcmask 523264
      %v380 = vsel %vm378, %v341, 0
      %382 = vmatprep.subr.bf16.mxu0 0
      %383 = vmatpush1.bf16.msra.mxu0 0
      %384 = vmatprep.subr.bf16.mxu0 0
      %385 = vmatpush1.bf16.msra.mxu0 0
      %386 = vmatprep.subr.bf16.mxu0 0
      %387 = vmatpush1.bf16.msra.mxu0 0
      %388 = vmatprep.subr.bf16.mxu0 0
      %389 = vmatpush1.bf16.msra.mxu0 0
      %390 = vmatprep.subr.bf16.mxu0 0
      %391 = vmatpush1.bf16.msra.mxu0 %v373
      %392 = vmatprep.subr.bf16.mxu0 0
      %393 = vmatpush1.bf16.msra.mxu0 %v372
      %394 = vmatprep.subr.bf16.mxu0 0
      %395 = vmatpush1.bf16.msra.mxu0 %v371
      %396 = vmatprep.subr.bf16.mxu0 0
      %397 = vmatpush1.bf16.msra.mxu0 %v370
      %398 = vmatprep.subr.bf16.mxu0 0
      %399 = vmatpush2.bf16.msra.mxu0 0
      %400 = vmatprep.subr.bf16.mxu0 0
      %401 = vmatpush2.bf16.msra.mxu0 0
      %402 = vmatprep.subr.bf16.mxu0 0
      %403 = vmatpush2.bf16.msra.mxu0 0
      %404 = vmatprep.subr.bf16.mxu0 0
      %405 = vmatpush2.bf16.msra.mxu0 0
      %406 = vmatprep.subr.bf16.mxu0 0
      %407 = vmatpush2.bf16.msra.mxu0 0
      %408 = vmatprep.subr.bf16.mxu0 0
      %409 = vmatpush2.bf16.msra.mxu0 0
      %410 = vmatprep.subr.bf16.mxu0 0
      %411 = vmatpush2.bf16.msra.mxu0 0
      %412 = vmatprep.subr.bf16.mxu0 0
      %413 = vmatpush2.bf16.msra.mxu0 0
      %414 = vmatprep.mubr.bf16.mxu0 0
      %415 = vmatmul.mubr.bf16.gmra.mxu0 %v380
      %v416 = vpop.f32.mrf.mxu0
      %v417 = vadd.f32 %v353, %v416
      %v418 = vpop.f32.mrf.mxu0
      %v419 = vpop.f32.mrf.mxu0
      %v420 = vadd.f32 %v353, %v419
      %v421 = vpop.f32.mrf.mxu0
      %422 = vdwg.mxu0
      %v423 = vmax.f32 %v417, 0.0
      %v424 = vmax.f32 %v420, 0.0
      %v425 = vpack.c.bf16 %v424, %v423
      %426 = vmatprep.subr.bf16.mxu0 0
      %427 = vmatpush1.bf16.msra.mxu0 0
      %428 = vmatprep.subr.bf16.mxu0 0
      %429 = vmatpush1.bf16.msra.mxu0 0
      %430 = vmatprep.subr.bf16.mxu0 0
      %431 = vmatpush1.bf16.msra.mxu0 0
      %432 = vmatprep.subr.bf16.mxu0 0
      %433 = vmatpush1.bf16.msra.mxu0 0
      %434 = vmatprep.subr.bf16.mxu0 0
      %435 = vmatpush1.bf16.msra.mxu0 0
      %436 = vmatprep.subr.bf16.mxu0 0
      %437 = vmatpush1.bf16.msra.mxu0 0
      %438 = vmatprep.subr.bf16.mxu0 0
      %439 = vmatpush1.bf16.msra.mxu0 0
      %440 = vmatprep.subr.bf16.mxu0 0
      %441 = vmatpush1.bf16.msra.mxu0 %v425
      %442 = vmatprep.subr.bf16.mxu0 0
      %443 = vmatpush2.bf16.msra.mxu0 0
      %444 = vmatprep.subr.bf16.mxu0 0
      %445 = vmatpush2.bf16.msra.mxu0 0
      %446 = vmatprep.subr.bf16.mxu0 0
      %447 = vmatpush2.bf16.msra.mxu0 0
      %448 = vmatprep.subr.bf16.mxu0 0
      %449 = vmatpush2.bf16.msra.mxu0 0
      %450 = vmatprep.subr.bf16.mxu0 0
      %451 = vmatpush2.bf16.msra.mxu0 0
      %452 = vmatprep.subr.bf16.mxu0 0
      %453 = vmatpush2.bf16.msra.mxu0 0
      %454 = vmatprep.subr.bf16.mxu0 0
      %455 = vmatpush2.bf16.msra.mxu0 0
      %456 = vmatprep.subr.bf16.mxu0 0
      %457 = vmatpush2.bf16.msra.mxu0 0
      %458 = vmatprep.mubr.bf16.mxu0 0
      %459 = vmatmul.mubr.bf16.gmra.mxu0 %v298
      %v460 = vpop.f32.mrf.mxu0
      %v461 = vadd.f32 0.0, %v460
      %v462 = vpop.f32.mrf.mxu0
      %v463 = vpop.f32.mrf.mxu0
      %v464 = vadd.f32 0.0, %v463
      %v465 = vpop.f32.mrf.mxu0
      %466 = vdwg.mxu0
      %v467 = vpack.c.bf16 %v464, %v461
      %v468 = vld [vmem:[%s3 + $0x20] sm:$0xf]
      %v469 = vld [vmem:[%s3 + $0x24] sm:$0xf]
      %v470 = vld [vmem:[%s3 + $0x28] sm:$0xf]
      %v471 = vld [vmem:[%s3 + $0x2c] sm:$0xf]
      %v472 = vld [vmem:[%s3 + $0x30] sm:$0xf]
      %v473 = vld [vmem:[%s3 + $0x34] sm:$0xf]
      %v474 = vld [vmem:[%s3 + $0x38] sm:$0xf]
      %v475 = vld [vmem:[%s3 + $0x3c] sm:$0xf]
      %v476 = vld [vmem:[%s3 + $0x40] sm:$0xf]
      %v477 = vld [vmem:[%s3 + $0x44] sm:$0xf]
      %v478 = vld [vmem:[%s3 + $0x48] sm:$0xf]
      %v479 = vld [vmem:[%s3 + $0x4c] sm:$0xf]
      %v480 = vld [vmem:[%s3 + $0x50] sm:$0xf]
      %v481 = vld [vmem:[%s3 + $0x54] sm:$0xf]
      %v482 = vld [vmem:[%s3 + $0x58] sm:$0xf]
      %v483 = vld [vmem:[%s3 + $0x5c] sm:$0xf]
      %v484 = vlaneseq
      %v485 = vshrl.u32 %v484, 7
      %v486 = vsub.s32 1, %v485
      %v487 = vrot.slane %v282, %v486
      %v504 = vunpack.c.l.b16 %v468
      %v505 = vunpack.c.l.b16 %v469
      %v506 = vunpack.c.l.b16 %v470
      %v507 = vunpack.c.l.b16 %v471
      %v508 = vunpack.c.l.b16 %v472
      %v509 = vunpack.c.l.b16 %v473
      %v510 = vunpack.c.l.b16 %v474
      %v511 = vunpack.c.l.b16 %v475
      %v512 = vunpack.c.l.b16 %v476
      %v513 = vunpack.c.l.b16 %v477
      %v514 = vunpack.c.l.b16 %v478
      %v515 = vunpack.c.l.b16 %v479
      %v516 = vunpack.c.l.b16 %v480
      %v517 = vunpack.c.l.b16 %v481
      %v518 = vunpack.c.l.b16 %v482
      %v519 = vunpack.c.l.b16 %v483
      %v520 = vpack.c.b16 %v505, %v504
      %v521 = vpack.c.b16 %v507, %v506
      %v522 = vpack.c.b16 %v509, %v508
      %v523 = vpack.c.b16 %v511, %v510
      %v524 = vpack.c.b16 %v513, %v512
      %v525 = vpack.c.b16 %v515, %v514
      %v526 = vpack.c.b16 %v517, %v516
      %v527 = vpack.c.b16 %v519, %v518
      %536 = vmatprep.subr.bf16.mxu0 0
      %537 = vmatpush1.bf16.msra.mxu0 %v527
      %538 = vmatprep.subr.bf16.mxu0 0
      %539 = vmatpush1.bf16.msra.mxu0 %v526
      %540 = vmatprep.subr.bf16.mxu0 0
      %541 = vmatpush1.bf16.msra.mxu0 %v525
      %542 = vmatprep.subr.bf16.mxu0 0
      %543 = vmatpush1.bf16.msra.mxu0 %v524
      %544 = vmatprep.subr.bf16.mxu0 0
      %545 = vmatpush1.bf16.msra.mxu0 %v523
      %546 = vmatprep.subr.bf16.mxu0 0
      %547 = vmatpush1.bf16.msra.mxu0 %v522
      %548 = vmatprep.subr.bf16.mxu0 0
      %549 = vmatpush1.bf16.msra.mxu0 %v521
      %550 = vmatprep.subr.bf16.mxu0 0
      %551 = vmatpush1.bf16.msra.mxu0 %v520
      %552 = vmatprep.subr.bf16.mxu0 0
      %553 = vmatpush2.bf16.msra.mxu0 0
      %554 = vmatprep.subr.bf16.mxu0 0
      %555 = vmatpush2.bf16.msra.mxu0 0
      %556 = vmatprep.subr.bf16.mxu0 0
      %557 = vmatpush2.bf16.msra.mxu0 0
      %558 = vmatprep.subr.bf16.mxu0 0
      %559 = vmatpush2.bf16.msra.mxu0 0
      %560 = vmatprep.subr.bf16.mxu0 0
      %561 = vmatpush2.bf16.msra.mxu0 0
      %562 = vmatprep.subr.bf16.mxu0 0
      %563 = vmatpush2.bf16.msra.mxu0 0
      %564 = vmatprep.subr.bf16.mxu0 0
      %565 = vmatpush2.bf16.msra.mxu0 0
      %566 = vmatprep.subr.bf16.mxu0 0
      %567 = vmatpush2.bf16.msra.mxu0 0
      %568 = vmatprep.mubr.bf16.mxu0 0
      %569 = vmatmul.mubr.bf16.gmra.mxu0 %v467
      %v570 = vpop.f32.mrf.mxu0
      %v571 = vadd.f32 %v487, %v570
      %v572 = vpop.f32.mrf.mxu0
      %v573 = vpop.f32.mrf.mxu0
      %v574 = vadd.f32 %v487, %v573
      %v575 = vpop.f32.mrf.mxu0
      %576 = vdwg.mxu0
      %v577 = vpack.c.bf16 %v574, %v571
      %v578 = vlaneseq
      %v579 = vand.u32 %v578, 127
      %v580 = vld [vmem:[%s273] sm:$0xff]
      %v581 = vld [vmem:[%s273 + $0x8] sm:$0xff]
      %582 = vset.pattern.permute.xlu0 0
      %583 = vperm.xlu0 %582, %v580
      %v584 = vpop.permute.xlu0 %583
      %585 = vset.pattern.permute.xlu0 0
      %586 = vperm.xlu0 %585, %v581
      %v587 = vpop.permute.xlu0 %586
      %vm588 = vcmp.eq.s32.totalorder %v579, %v584
      %vm589 = vcmp.eq.s32.totalorder %v579, %v587
      %v590 = vsel %vm588, 1, 0
      %v591 = vsel %vm589, 1, 0
      %v592 = vcvt.s32.f32 %v590
      %v593 = vcvt.s32.f32 %v591
      %v594 = vpack.c.bf16 %v593, %v592
      %v596 = vsel %vm296, %v594, 0
      %598 = vmatprep.subr.bf16.mxu0 0
      %599 = vmatpush1.bf16.msra.mxu0 0
      %600 = vmatprep.subr.bf16.mxu0 0
      %601 = vmatpush1.bf16.msra.mxu0 0
      %602 = vmatprep.subr.bf16.mxu0 0
      %603 = vmatpush1.bf16.msra.mxu0 0
      %604 = vmatprep.subr.bf16.mxu0 0
      %605 = vmatpush1.bf16.msra.mxu0 0
      %606 = vmatprep.subr.bf16.mxu0 0
      %607 = vmatpush1.bf16.msra.mxu0 0
      %608 = vmatprep.subr.bf16.mxu0 0
      %609 = vmatpush1.bf16.msra.mxu0 0
      %610 = vmatprep.subr.bf16.mxu0 0
      %611 = vmatpush1.bf16.msra.mxu0 0
      %612 = vmatprep.subr.bf16.mxu0 0
      %613 = vmatpush1.bf16.msra.mxu0 %v577
      %614 = vmatprep.subr.bf16.mxu0 0
      %615 = vmatpush2.bf16.msra.mxu0 0
      %616 = vmatprep.subr.bf16.mxu0 0
      %617 = vmatpush2.bf16.msra.mxu0 0
      %618 = vmatprep.subr.bf16.mxu0 0
      %619 = vmatpush2.bf16.msra.mxu0 0
      %620 = vmatprep.subr.bf16.mxu0 0
      %621 = vmatpush2.bf16.msra.mxu0 0
      %622 = vmatprep.subr.bf16.mxu0 0
      %623 = vmatpush2.bf16.msra.mxu0 0
      %624 = vmatprep.subr.bf16.mxu0 0
      %625 = vmatpush2.bf16.msra.mxu0 0
      %626 = vmatprep.subr.bf16.mxu0 0
      %627 = vmatpush2.bf16.msra.mxu0 0
      %628 = vmatprep.subr.bf16.mxu0 0
      %629 = vmatpush2.bf16.msra.mxu0 0
      %630 = vmatprep.mubr.bf16.mxu0 0
      %631 = vmatmul.mubr.bf16.gmra.mxu0 %v596
      %v632 = vpop.f32.mrf.mxu0
      %v633 = vadd.f32 0.0, %v632
      %v634 = vpop.f32.mrf.mxu0
      %v635 = vpop.f32.mrf.mxu0
      %v636 = vadd.f32 0.0, %v635
      %v637 = vpop.f32.mrf.mxu0
      %638 = vdwg.mxu0
      %v639 = vpack.c.bf16 %v633, %v633
      %v640 = vpack.c.bf16 %v636, %v636
      %v641 = vld [vmem:[%s4] sm:$0xf]
      %v642 = vld [vmem:[%s4 + $0x4] sm:$0xf]
      %v643 = vld [vmem:[%s4 + $0x8] sm:$0xf]
      %v644 = vld [vmem:[%s4 + $0xc] sm:$0xf]
      %v645 = vld [vmem:[%s4 + $0x10] sm:$0xf]
      %v646 = vld [vmem:[%s4 + $0x14] sm:$0xf]
      %v647 = vld [vmem:[%s4 + $0x18] sm:$0xf]
      %v648 = vld [vmem:[%s4 + $0x1c] sm:$0xf]
      %v649 = vld [vmem:[%s4 + $0x20] sm:$0xf]
      %v650 = vld [vmem:[%s4 + $0x24] sm:$0xf]
      %v651 = vld [vmem:[%s4 + $0x28] sm:$0xf]
      %v652 = vld [vmem:[%s4 + $0x2c] sm:$0xf]
      %v653 = vld [vmem:[%s4 + $0x30] sm:$0xf]
      %v654 = vld [vmem:[%s4 + $0x34] sm:$0xf]
      %v655 = vld [vmem:[%s4 + $0x38] sm:$0xf]
      %v656 = vld [vmem:[%s4 + $0x3c] sm:$0xf]
      %v657 = vld [vmem:[%s4 + $0x40] sm:$0xf]
      %v658 = vld [vmem:[%s4 + $0x44] sm:$0xf]
      %v659 = vld [vmem:[%s4 + $0x48] sm:$0xf]
      %v660 = vld [vmem:[%s4 + $0x4c] sm:$0xf]
      %v661 = vld [vmem:[%s4 + $0x50] sm:$0xf]
      %v662 = vld [vmem:[%s4 + $0x54] sm:$0xf]
      %v663 = vld [vmem:[%s4 + $0x58] sm:$0xf]
      %v664 = vld [vmem:[%s4 + $0x5c] sm:$0xf]
      %v665 = vld [vmem:[%s4 + $0x60] sm:$0xf]
      %v666 = vld [vmem:[%s4 + $0x64] sm:$0xf]
      %v667 = vld [vmem:[%s4 + $0x68] sm:$0xf]
      %v668 = vld [vmem:[%s4 + $0x6c] sm:$0xf]
      %v669 = vld [vmem:[%s4 + $0x70] sm:$0xf]
      %v670 = vld [vmem:[%s4 + $0x74] sm:$0xf]
      %v671 = vld [vmem:[%s4 + $0x78] sm:$0xf]
      %v672 = vld [vmem:[%s4 + $0x7c] sm:$0xf]
      %v673 = vlaneseq
      %v674 = vshrl.u32 %v673, 7
      %v675 = vsub.s32 2, %v674
      %v676 = vrot.slane %v282, %v675
      %v709 = vunpack.c.l.b16 %v641
      %v710 = vunpack.c.l.b16 %v642
      %v711 = vunpack.c.l.b16 %v643
      %v712 = vunpack.c.l.b16 %v644
      %v713 = vunpack.c.l.b16 %v645
      %v714 = vunpack.c.l.b16 %v646
      %v715 = vunpack.c.l.b16 %v647
      %v716 = vunpack.c.l.b16 %v648
      %v717 = vunpack.c.l.b16 %v649
      %v718 = vunpack.c.l.b16 %v650
      %v719 = vunpack.c.l.b16 %v651
      %v720 = vunpack.c.l.b16 %v652
      %v721 = vunpack.c.l.b16 %v653
      %v722 = vunpack.c.l.b16 %v654
      %v723 = vunpack.c.l.b16 %v655
      %v724 = vunpack.c.l.b16 %v656
      %v725 = vunpack.c.l.b16 %v657
      %v726 = vunpack.c.l.b16 %v658
      %v727 = vunpack.c.l.b16 %v659
      %v728 = vunpack.c.l.b16 %v660
      %v729 = vunpack.c.l.b16 %v661
      %v730 = vunpack.c.l.b16 %v662
      %v731 = vunpack.c.l.b16 %v663
      %v732 = vunpack.c.l.b16 %v664
      %v733 = vunpack.c.l.b16 %v665
      %v734 = vunpack.c.l.b16 %v666
      %v735 = vunpack.c.l.b16 %v667
      %v736 = vunpack.c.l.b16 %v668
      %v737 = vunpack.c.l.b16 %v669
      %v738 = vunpack.c.l.b16 %v670
      %v739 = vunpack.c.l.b16 %v671
      %v740 = vunpack.c.l.b16 %v672
      %v741 = vpack.c.b16 %v710, %v709
      %v742 = vpack.c.b16 %v712, %v711
      %v743 = vpack.c.b16 %v714, %v713
      %v744 = vpack.c.b16 %v716, %v715
      %v745 = vpack.c.b16 %v718, %v717
      %v746 = vpack.c.b16 %v720, %v719
      %v747 = vpack.c.b16 %v722, %v721
      %v748 = vpack.c.b16 %v724, %v723
      %v749 = vpack.c.b16 %v726, %v725
      %v750 = vpack.c.b16 %v728, %v727
      %v751 = vpack.c.b16 %v730, %v729
      %v752 = vpack.c.b16 %v732, %v731
      %v753 = vpack.c.b16 %v734, %v733
      %v754 = vpack.c.b16 %v736, %v735
      %v755 = vpack.c.b16 %v738, %v737
      %v756 = vpack.c.b16 %v740, %v739
      %773 = vmatprep.subr.bf16.mxu0 0
      %774 = vmatpush1.bf16.msra.mxu0 %v748
      %775 = vmatprep.subr.bf16.mxu0 0
      %776 = vmatpush1.bf16.msra.mxu0 %v747
      %777 = vmatprep.subr.bf16.mxu0 0
      %778 = vmatpush1.bf16.msra.mxu0 %v746
      %779 = vmatprep.subr.bf16.mxu0 0
      %780 = vmatpush1.bf16.msra.mxu0 %v745
      %781 = vmatprep.subr.bf16.mxu0 0
      %782 = vmatpush1.bf16.msra.mxu0 %v744
      %783 = vmatprep.subr.bf16.mxu0 0
      %784 = vmatpush1.bf16.msra.mxu0 %v743
      %785 = vmatprep.subr.bf16.mxu0 0
      %786 = vmatpush1.bf16.msra.mxu0 %v742
      %787 = vmatprep.subr.bf16.mxu0 0
      %788 = vmatpush1.bf16.msra.mxu0 %v741
      %789 = vmatprep.subr.bf16.mxu0 0
      %790 = vmatpush2.bf16.msra.mxu0 %v756
      %791 = vmatprep.subr.bf16.mxu0 0
      %792 = vmatpush2.bf16.msra.mxu0 %v755
      %793 = vmatprep.subr.bf16.mxu0 0
      %794 = vmatpush2.bf16.msra.mxu0 %v754
      %795 = vmatprep.subr.bf16.mxu0 0
      %796 = vmatpush2.bf16.msra.mxu0 %v753
      %797 = vmatprep.subr.bf16.mxu0 0
      %798 = vmatpush2.bf16.msra.mxu0 %v752
      %799 = vmatprep.subr.bf16.mxu0 0
      %800 = vmatpush2.bf16.msra.mxu0 %v751
      %801 = vmatprep.subr.bf16.mxu0 0
      %802 = vmatpush2.bf16.msra.mxu0 %v750
      %803 = vmatprep.subr.bf16.mxu0 0
      %804 = vmatpush2.bf16.msra.mxu0 %v749
      %805 = vmatprep.mubr.bf16.mxu0 %v640
      %806 = vmatmul.mubr.bf16.gmra.mxu0 %v639
      %v807 = vpop.f32.mrf.mxu0
      %v808 = vadd.f32 %v676, %v807
      %v809 = vpop.f32.mrf.mxu0
      %v810 = vpop.f32.mrf.mxu0
      %v811 = vpop.f32.mrf.mxu0
      %812 = vdwg.mxu0
      %v813 = vmax.f32 %v808, 0.0
      %v814 = vpack.c.bf16 %v813, %v813
      %v815 = vld [vmem:[%s5] sm:$0xf]
      %v816 = vld [vmem:[%s5 + $0x4] sm:$0xf]
      %v817 = vld [vmem:[%s5 + $0x8] sm:$0xf]
      %v818 = vld [vmem:[%s5 + $0xc] sm:$0xf]
      %v819 = vld [vmem:[%s5 + $0x10] sm:$0xf]
      %v820 = vld [vmem:[%s5 + $0x14] sm:$0xf]
      %v821 = vld [vmem:[%s5 + $0x18] sm:$0xf]
      %v822 = vld [vmem:[%s5 + $0x1c] sm:$0xf]
      %v823 = vlaneseq
      %v824 = vshrl.u32 %v823, 7
      %v825 = vsub.s32 3, %v824
      %v826 = vrot.slane %v282, %v825
      %v835 = vunpack.c.l.b16 %v815
      %v836 = vunpack.c.l.b16 %v816
      %v837 = vunpack.c.l.b16 %v817
      %v838 = vunpack.c.l.b16 %v818
      %v839 = vunpack.c.l.b16 %v819
      %v840 = vunpack.c.l.b16 %v820
      %v841 = vunpack.c.l.b16 %v821
      %v842 = vunpack.c.l.b16 %v822
      %v843 = vpack.c.b16 %v836, %v835
      %v844 = vpack.c.b16 %v838, %v837
      %v845 = vpack.c.b16 %v840, %v839
      %v846 = vpack.c.b16 %v842, %v841
      %v852 = vsel %vm378, %v814, 0
      %854 = vmatprep.subr.bf16.mxu0 0
      %855 = vmatpush1.bf16.msra.mxu0 0
      %856 = vmatprep.subr.bf16.mxu0 0
      %857 = vmatpush1.bf16.msra.mxu0 0
      %858 = vmatprep.subr.bf16.mxu0 0
      %859 = vmatpush1.bf16.msra.mxu0 0
      %860 = vmatprep.subr.bf16.mxu0 0
      %861 = vmatpush1.bf16.msra.mxu0 0
      %862 = vmatprep.subr.bf16.mxu0 0
      %863 = vmatpush1.bf16.msra.mxu0 %v846
      %864 = vmatprep.subr.bf16.mxu0 0
      %865 = vmatpush1.bf16.msra.mxu0 %v845
      %866 = vmatprep.subr.bf16.mxu0 0
      %867 = vmatpush1.bf16.msra.mxu0 %v844
      %868 = vmatprep.subr.bf16.mxu0 0
      %869 = vmatpush1.bf16.msra.mxu0 %v843
      %870 = vmatprep.subr.bf16.mxu0 0
      %871 = vmatpush2.bf16.msra.mxu0 0
      %872 = vmatprep.subr.bf16.mxu0 0
      %873 = vmatpush2.bf16.msra.mxu0 0
      %874 = vmatprep.subr.bf16.mxu0 0
      %875 = vmatpush2.bf16.msra.mxu0 0
      %876 = vmatprep.subr.bf16.mxu0 0
      %877 = vmatpush2.bf16.msra.mxu0 0
      %878 = vmatprep.subr.bf16.mxu0 0
      %879 = vmatpush2.bf16.msra.mxu0 0
      %880 = vmatprep.subr.bf16.mxu0 0
      %881 = vmatpush2.bf16.msra.mxu0 0
      %882 = vmatprep.subr.bf16.mxu0 0
      %883 = vmatpush2.bf16.msra.mxu0 0
      %884 = vmatprep.subr.bf16.mxu0 0
      %885 = vmatpush2.bf16.msra.mxu0 0
      %886 = vmatprep.mubr.bf16.mxu0 0
      %887 = vmatmul.mubr.bf16.gmra.mxu0 %v852
      %v888 = vpop.f32.mrf.mxu0
      %v889 = vadd.f32 %v826, %v888
      %v890 = vpop.f32.mrf.mxu0
      %v891 = vpop.f32.mrf.mxu0
      %v892 = vpop.f32.mrf.mxu0
      %893 = vdwg.mxu0
      %v894 = vmax.f32 %v889, 0.0
      %v895 = vlaneseq
      %v896 = vshrl.u32 %v895, 7
      %v897 = vsub.s32 4, %v896
      %v898 = vrot.slane %v282, %v897
      %v899 = vmul.f32 %v894, %v898
      %vm900 = vcmask 261120
      %v901 = vsel %vm900, %v899, 0.0
      %902 = vadd.xlane.f32.xlu0 %v901
      %v903 = vpop.xlane.xlu0 %902
      %v904 = vlaneseq
      %v905 = vshrl.u32 %v904, 7
      %v906 = vsub.s32 5, %v905
      %v907 = vrot.slane %v282, %v906
      %v908 = vadd.f32 %v903, %v907
      %v909 = vxor.u32 %v908, 2147483648
      %v910 = vmul.f32 %v909, 1.442695
      %v911 = vpow.pop %v910
      %v912 = vadd.f32 %v911, 1.0
      %v913 = vrcp.pop %v912
      %v914 = vmul.f32 1.0, %v913
      %916 = vset.pattern.permute.xlu0 0
      %917 = vperm.xlu0 %916, %v914
      %v918 = vpop.permute.xlu0 %917
      %920 = vst [vmem:[%s278] sm:$0xff] %v918
      %p921 = scmp.lt.s32.totalorder %s18, 1
      %s922 = scalar_select %p921, %s18, 1
      %s923 = smul.addr %s922, 8
      %s924 = scalar_lea.vmem %s7, %s923
      // Predicated region
      $region49: #{temporal_gnn_forward.1} parent=47 // pred_check
        %p925 = pneg %p188
      $region50: #{temporal_gnn_forward.1} parent=47 // pred_check_branch
        %927 = sbr.rel (%p925) target = $region52
      $region51: #{temporal_gnn_forward.1} parent=47 // pred_region
        _
      $region52: #{temporal_gnn_forward.1} parent=47 // pred_fallthru
        _
    $region48: #{temporal_gnn_forward.1} parent=5 // pred_fallthru
      _
    %p928 = scmp.le.s32.totalorder 2, %s13
    // Predicated region
    $region53: #{temporal_gnn_forward.1} parent=5 // pred_check
      %p929 = pneg %p928
    $region54: #{temporal_gnn_forward.1} parent=5 // pred_check_branch
      %931 = sbr.rel (%p929) target = $region56
    $region55: #{temporal_gnn_forward.1} parent=5 // pred_region
      %s932 = ssub.s32 %s13, 2
      // Predicated region
      $region57: #{temporal_gnn_forward.1} parent=55 // pred_check
        %p933 = pneg %p194
      $region58: #{temporal_gnn_forward.1} parent=55 // pred_check_branch
        %935 = sbr.rel (%p933) target = $region60
      $region59: #{temporal_gnn_forward.1} parent=55 // pred_region
        %p936 = scmp.lt.s32.totalorder %s19, 1
        %s937 = scalar_select %p936, %s19, 1
        %s938 = smul.addr %s937, 8
        %s939 = scalar_lea.vmem %s7, %s938
      $region60: #{temporal_gnn_forward.1} parent=55 // pred_fallthru
        _
    $region56: #{temporal_gnn_forward.1} parent=5 // pred_fallthru
      _
  $region6: #{temporal_gnn_forward.1} parent=0 // loop_footer
    %s17 = sadd.s32 1, %s13
  $region7: #{temporal_gnn_forward.1} parent=0 // loop_footer_branch
    %12 = sbr.rel target = $region3
  $region8: #{temporal_gnn_forward.1} parent=0 // loop_exit
    _

</llo_original>
